<compile_context>
chip_gen: v7x
topology: tpu7x:2x2x1
jax: 0.10.0
libtpu: 0.0.40
codegen_flags: <defaults>
</compile_context>

<pallas_src>
import numpy as np
import jax
import jax.numpy as jnp
from jax import lax
from jax.experimental import pallas as pl
from jax.experimental.pallas import tpu as pltpu


def _round_up(x, m=128):
    return ((x + m - 1) // m) * m


def _choose_tile_b(B, max_tile=1024):
    """Largest 128-multiple tile (<= max_tile) that keeps the grid >= 2 tiles
    (so v7x's two TensorCores both get work); falls back to a single 128-row
    tile for tiny batches."""
    for t in (1024, 512, 256, 128):
        if t <= max_tile and pl.cdiv(max(B, 1), t) >= 2:
            return t
    return 128


# ----------------------------- Pallas kernel --------------------------------
def _td3_value_kernel(*refs):
    """refs = (obs, act, w0_obs, w0_act, b0, [w_k, b_k]*, w_lastT, b_last, out).

    obs:     (TILE_B, i_size)        act:     (TILE_B, a_dim)
    w0_obs:  (i_size, h0_pad)        w0_act:  (a_dim, h0_pad)     (compute dtype)
    b0:      (1, h0_pad) f32
    w_k:     (h_pad, h_pad) compute dtype;  b_k: (1, h_pad) f32
    w_lastT: (8, h_pad) compute dtype (row 0 = last-layer weight, rows 1..7 = 0)
    b_last:  (8, 1) f32               (only [0, 0] nonzero)
    out:     (8, TILE_B) f32          (row 0 holds the values, batch along lanes)
    """
    obs_ref, act_ref = refs[0], refs[1]
    w0o_ref, w0a_ref, b0_ref = refs[2], refs[3], refs[4]
    wlt_ref, bl_ref, out_ref = refs[-3], refs[-2], refs[-1]
    mid = refs[5:-3]                       # alternating (w, b) hidden layers
    n_mid = len(mid) // 2

    i_size = obs_ref.shape[1]
    a_dim = act_ref.shape[1]

    obs = obs_ref[...]                     # (TILE_B, i_size) f32
    act = act_ref[...]                     # (TILE_B, a_dim)  f32
    w0o = w0o_ref[...]
    w0a = w0a_ref[...]

    # ---- layer 0: concat(obs, act) @ W0 + b0, without ever building fv ----
    acc = b0_ref[...]                      # (1, h0_pad) f32
    if i_size + a_dim <= 32:
        # Tiny feature dims (MountainCar: 2 + 1): a handful of VPU broadcast
        # MACs is cheaper than any MXU contraction and needs no padding.
        for k in range(i_size):
            acc = acc + obs[:, k:k + 1] * w0o[k:k + 1, :]
        for k in range(a_dim):
            acc = acc + act[:, k:k + 1] * w0a[k:k + 1, :]
    else:
        acc = acc + jnp.dot(obs.astype(w0o.dtype), w0o,
                            preferred_element_type=jnp.float32)
        acc = acc + jnp.dot(act.astype(w0a.dtype), w0a,
                            preferred_element_type=jnp.float32)
    x = jnp.maximum(acc, 0.0)              # (TILE_B, h0_pad) f32

    # ---- hidden layers: dense lane-full (TILE_B,128)x(128,128) MXU matmuls ----
    for j in range(n_mid):
        w = mid[2 * j][...]                # (h_pad, h_pad) compute dtype
        b = mid[2 * j + 1][...]            # (1, h_pad) f32
        y = jnp.dot(x.astype(w.dtype), w, preferred_element_type=jnp.float32) + b
        x = jnp.maximum(y, 0.0)

    # ---- last layer, emitted lane-dense: (8, h_pad) . (TILE_B, h_pad)^T ----
    wl = wlt_ref[...]                      # (8, h_pad) compute dtype
    val = lax.dot_general(wl, x.astype(wl.dtype),
                          (((1,), (1,)), ((), ())),
                          preferred_element_type=jnp.float32)   # (8, TILE_B)
    out_ref[...] = (val + bl_ref[...]).astype(out_ref.dtype)


# --------------------------- one-time param prep ------------------------------
def prepare_params(params, i_size, compute_dtype=jnp.float32):
    """Pad / cast / re-layout every Linear layer exactly once.

    params: list of (W:(f_in, f_out), b:(f_out,)).  Zero padding is numerically
    inert through Linear+ReLU.  Layer 0 is split into obs / act halves; the last
    layer (f_out == 1) is stored transposed as an (8, h_pad) row block so the
    kernel can write a lane-dense (8, TILE_B) output tile.
    compute_dtype=jnp.bfloat16 is recommended on v6e/v7x (f32 MXU accumulation
    is kept; bias-add / ReLU stay f32).
    Returns the flat tuple (w0_obs, w0_act, b0, [w_k, b_k]*, w_lastT, b_last).
    """
    assert len(params) >= 2
    w0, b0 = params[0]
    in0, h0 = w0.shape
    a_dim = in0 - i_size
    assert a_dim >= 1
    h0_pad = _round_up(h0)

    w0o = jnp.zeros((i_size, h0_pad), compute_dtype)
    w0o = w0o.at[:, :h0].set(w0[:i_size].astype(compute_dtype))
    w0a = jnp.zeros((a_dim, h0_pad), compute_dtype)
    w0a = w0a.at[:, :h0].set(w0[i_size:].astype(compute_dtype))
    b0p = jnp.zeros((1, h0_pad), jnp.float32).at[0, :h0].set(b0.astype(jnp.float32))
    prepared = [w0o, w0a, b0p]

    for w, b in params[1:-1]:
        f_in, f_out = w.shape
        in_pad, out_pad = _round_up(f_in), _round_up(f_out)
        wp = jnp.zeros((in_pad, out_pad), compute_dtype)
        wp = wp.at[:f_in, :f_out].set(w.astype(compute_dtype))
        bp = jnp.zeros((1, out_pad), jnp.float32).at[0, :f_out].set(b.astype(jnp.float32))
        prepared += [wp, bp]

    wl, bl = params[-1]
    f_in, f_out = wl.shape
    assert f_out == 1, "TD3 value head must have a single output"
    in_pad = _round_up(f_in)
    wlt = jnp.zeros((8, in_pad), compute_dtype)
    wlt = wlt.at[0, :f_in].set(wl[:, 0].astype(compute_dtype))
    blp = jnp.zeros((8, 1), jnp.float32).at[0, 0].set(bl[0].astype(jnp.float32))
    prepared += [wlt, blp]
    return tuple(prepared)


# ------------------------- unbatched (actor-style) path -----------------------
def _forward_unbatched(obs, act, prepared):
    """B=1 latency path: plain XLA (three tiny dots) — no padding one sample to
    a 128-row tile, no pallas_call dispatch."""
    w0o, w0a, b0 = prepared[0], prepared[1], prepared[2]
    wlt, bl = prepared[-2], prepared[-1]
    mid = prepared[3:-2]
    x = (obs[None, :].astype(jnp.float32) @ w0o.astype(jnp.float32)
         + act[None, :].astype(jnp.float32) @ w0a.astype(jnp.float32) + b0)
    x = jnp.maximum(x, 0.0)
    for j in range(len(mid) // 2):
        w, b = mid[2 * j], mid[2 * j + 1]
        x = jnp.maximum(x @ w.astype(jnp.float32) + b, 0.0)
    val = x @ wlt.astype(jnp.float32).T + bl.T          # (1, 8)
    return val[0, 0:1]                                  # (1,)


# ------------------------------- wrapper -------------------------------------
def td3_value_forward(observation, action, prepared, tile_b=None):
    """Forward pass.

    observation: (i_size,) or (B, i_size); action: (a_dim,) or (B, a_dim).
    prepared:    output of prepare_params.
    Returns (1,) for unbatched inputs (matching the PyTorch module) or (B, 1).
    """
    if observation.ndim == 1:
        return _forward_unbatched(observation.astype(jnp.float32),
                                  action.astype(jnp.float32), prepared)

    obs = observation.astype(jnp.float32)
    act = action.astype(jnp.float32)
    B = obs.shape[0]
    if tile_b is None:
        tile_b = _choose_tile_b(B)
    n_tiles = pl.cdiv(B, tile_b)
    b_pad = n_tiles * tile_b
    if b_pad != B:
        obs = jnp.pad(obs, ((0, b_pad - B), (0, 0)))
        act = jnp.pad(act, ((0, b_pad - B), (0, 0)))

    in_specs = [
        pl.BlockSpec((tile_b, obs.shape[1]), lambda i: (i, 0)),
        pl.BlockSpec((tile_b, act.shape[1]), lambda i: (i, 0)),
    ]
    # Constant index_map -> weights/biases stay VMEM-resident across the grid.
    in_specs += [pl.BlockSpec(p.shape, lambda i: (0, 0)) for p in prepared]

    # Output: (8, b_pad) with batch along lanes; tile i writes lane block i.
    out = pl.pallas_call(
        _td3_value_kernel,
        out_shape=jax.ShapeDtypeStruct((8, b_pad), jnp.float32),
        grid=(n_tiles,),
        in_specs=in_specs,
        out_specs=pl.BlockSpec((8, tile_b), lambda i: (0, i)),
        compiler_params=pltpu.CompilerParams(
            dimension_semantics=("parallel",)),
    )(obs, act, *prepared)

    return out[0, :B].reshape(B, 1)        # contiguous row slice, no column gather


# --------------------------- parameter init ----------------------------------
def init_params(key, i_size, a_dim, hidden_sizes):
    """Mirrors the PyTorch module's __init__, including its quirk: the *first*
    layer gets re-initialized to uniform(-0.003, 0.003) weight+bias (the source
    writes `first` where standard TD3 would re-init `last`); middle layers get
    uniform(+-1/sqrt(fan_in)) weight and zero bias; the last layer keeps the
    PyTorch default Linear init."""
    sizes = [i_size + a_dim] + list(hidden_sizes) + [1]
    params = []
    n_layers = len(sizes) - 1
    keys = jax.random.split(key, 2 * n_layers)
    for layer in range(n_layers):
        fan_in, fan_out = sizes[layer], sizes[layer + 1]
        wk, bk = keys[2 * layer], keys[2 * layer + 1]
        if layer == 0:
            w = jax.random.uniform(wk, (fan_in, fan_out), jnp.float32, -0.003, 0.003)
            b = jax.random.uniform(bk, (fan_out,), jnp.float32, -0.003, 0.003)
        elif layer < n_layers - 1:
            bound = 1.0 / np.sqrt(fan_in)
            w = jax.random.uniform(wk, (fan_in, fan_out), jnp.float32, -bound, bound)
            b = jnp.zeros((fan_out,), jnp.float32)
        else:
            bound = 1.0 / np.sqrt(fan_in)
            w = jax.random.uniform(wk, (fan_in, fan_out), jnp.float32, -bound, bound)
            b = jax.random.uniform(bk, (fan_out,), jnp.float32, -bound, bound)
        params.append((w, b))
    return params


# ------------------------------ reference ------------------------------------
def reference_forward(observation, action, params):
    obs = observation.reshape(1, -1) if observation.ndim == 1 else observation
    act = action.reshape(1, -1) if action.ndim == 1 else action
    x = jnp.concatenate([obs, act], axis=-1).astype(jnp.float32)
    n = len(params)
    for i, (w, b) in enumerate(params):
        x = x @ w + b.reshape(1, -1)
        if i < n - 1:
            x = jnp.maximum(x, 0.0)
    return x.reshape(1) if observation.ndim == 1 else x   # (1,) or (B, 1)


# --------------------------------- main ---------------------------------------
if __name__ == "__main__":
    i_size, a_dim = 2, 1                 # MountainCarContinuous: obs dim 2, act dim 1
    hidden_sizes = (32, 32)
    batch = 256                          # replay-buffer style batched evaluation

    key = jax.random.PRNGKey(0)
    k_obs, k_act, k_par = jax.random.split(key, 3)
    observations = jax.random.normal(k_obs, (batch, i_size), jnp.float32)
    actions = jax.random.normal(k_act, (batch, a_dim), jnp.float32)
    params = init_params(k_par, i_size, a_dim, hidden_sizes)
    ref = reference_forward(observations, actions, params)

    # --- float32 path (bit-tight vs reference) ---
    # tile_b=None -> auto: 128 here, so grid=(2,) and both v7x TensorCores get a tile.
    prepared_f32 = prepare_params(params, i_size, compute_dtype=jnp.float32)
    fwd_f32 = jax.jit(lambda o, a: td3_value_forward(o, a, prepared_f32))
    values = jax.block_until_ready(fwd_f32(observations, actions))        # (B, 1)
    np.testing.assert_allclose(np.asarray(values), np.asarray(ref), rtol=1e-5, atol=1e-5)

    # Unbatched call (original PyTorch semantics: 1-D obs/action -> (1,) value).
    # Uses the plain-XLA latency path (no Pallas dispatch for a single sample).
    v1 = jax.block_until_ready(fwd_f32(observations[0], actions[0]))
    np.testing.assert_allclose(
        np.asarray(v1),
        np.asarray(reference_forward(observations[0], actions[0], params)),
        rtol=1e-5, atol=1e-5)

    # --- bf16 compute path (recommended on v6e/v7x; f32 MXU accumulation) ---
    prepared_bf16 = prepare_params(params, i_size, compute_dtype=jnp.bfloat16)
    fwd_bf16 = jax.jit(lambda o, a: td3_value_forward(o, a, prepared_bf16))
    values_bf16 = jax.block_until_ready(fwd_bf16(observations, actions))
    np.testing.assert_allclose(np.asarray(values_bf16), np.asarray(ref),
                               rtol=5e-2, atol=5e-2)

    print("KERNEL_OK")
</pallas_src>

<mosaic_0001>
module attributes {stable_mosaic.version = 11 : i64} {
  func.func @_td3_value_kernel(%arg0: i32, %arg1: memref<128x2xf32, #tpu.memory_space<vmem>>, %arg2: memref<128x1xf32, #tpu.memory_space<vmem>>, %arg3: memref<2x128xf32, #tpu.memory_space<vmem>>, %arg4: memref<1x128xf32, #tpu.memory_space<vmem>>, %arg5: memref<1x128xf32, #tpu.memory_space<vmem>>, %arg6: memref<128x128xf32, #tpu.memory_space<vmem>>, %arg7: memref<1x128xf32, #tpu.memory_space<vmem>>, %arg8: memref<8x128xf32, #tpu.memory_space<vmem>>, %arg9: memref<8x1xf32, #tpu.memory_space<vmem>>, %arg10: memref<8x128xf32, #tpu.memory_space<vmem>>) attributes {dimension_semantics = [#tpu.dimension_semantics<parallel>], iteration_bounds = array<i64: 2>, scalar_prefetch = 0 : i64, scratch_operands = 0 : i64, tpu.core_type = #tpu.core_type<tc>, window_params = [{transform_indices = @transform_0, window_bounds = array<i64: 128, 2>}, {transform_indices = @transform_1, window_bounds = array<i64: 128, 1>}, {pipeline_mode = #tpu.pipeline_mode<synchronous>, transform_indices = @transform_2, window_bounds = array<i64: 2, 128>}, {pipeline_mode = #tpu.pipeline_mode<synchronous>, transform_indices = @transform_3, window_bounds = array<i64: 1, 128>}, {pipeline_mode = #tpu.pipeline_mode<synchronous>, transform_indices = @transform_4, window_bounds = array<i64: 1, 128>}, {pipeline_mode = #tpu.pipeline_mode<synchronous>, transform_indices = @transform_5, window_bounds = array<i64: 128, 128>}, {pipeline_mode = #tpu.pipeline_mode<synchronous>, transform_indices = @transform_6, window_bounds = array<i64: 1, 128>}, {pipeline_mode = #tpu.pipeline_mode<synchronous>, transform_indices = @transform_7, window_bounds = array<i64: 8, 128>}, {pipeline_mode = #tpu.pipeline_mode<synchronous>, transform_indices = @transform_8, window_bounds = array<i64: 8, 1>}, {transform_indices = @transform_9, window_bounds = array<i64: 8, 128>}]} {
    %c0 = arith.constant 0 : index
    %c0_0 = arith.constant 0 : index
    %0 = vector.load %arg1[%c0, %c0_0] : memref<128x2xf32, #tpu.memory_space<vmem>>, vector<128x2xf32>
    %c0_1 = arith.constant 0 : index
    %c0_2 = arith.constant 0 : index
    %1 = vector.load %arg2[%c0_1, %c0_2] : memref<128x1xf32, #tpu.memory_space<vmem>>, vector<128x1xf32>
    %c0_3 = arith.constant 0 : index
    %c0_4 = arith.constant 0 : index
    %2 = vector.load %arg3[%c0_3, %c0_4] : memref<2x128xf32, #tpu.memory_space<vmem>>, vector<2x128xf32>
    %c0_5 = arith.constant 0 : index
    %c0_6 = arith.constant 0 : index
    %3 = vector.load %arg4[%c0_5, %c0_6] : memref<1x128xf32, #tpu.memory_space<vmem>>, vector<1x128xf32>
    %c0_7 = arith.constant 0 : index
    %c0_8 = arith.constant 0 : index
    %4 = vector.load %arg5[%c0_7, %c0_8] : memref<1x128xf32, #tpu.memory_space<vmem>>, vector<1x128xf32>
    %5 = vector.extract_strided_slice %0 {offsets = [0, 0], sizes = [128, 1], strides = [1, 1]} : vector<128x2xf32> to vector<128x1xf32>
    %6 = vector.extract_strided_slice %2 {offsets = [0, 0], sizes = [1, 128], strides = [1, 1]} : vector<2x128xf32> to vector<1x128xf32>
    %7 = vector.broadcast %5 : vector<128x1xf32> to vector<128x128xf32>
    %8 = vector.broadcast %6 : vector<1x128xf32> to vector<128x128xf32>
    %9 = arith.mulf %7, %8 : vector<128x128xf32>
    %10 = vector.broadcast %4 : vector<1x128xf32> to vector<128x128xf32>
    %11 = arith.addf %10, %9 : vector<128x128xf32>
    %12 = vector.extract_strided_slice %0 {offsets = [0, 1], sizes = [128, 1], strides = [1, 1]} : vector<128x2xf32> to vector<128x1xf32>
    %13 = vector.extract_strided_slice %2 {offsets = [1, 0], sizes = [1, 128], strides = [1, 1]} : vector<2x128xf32> to vector<1x128xf32>
    %14 = vector.broadcast %12 : vector<128x1xf32> to vector<128x128xf32>
    %15 = vector.broadcast %13 : vector<1x128xf32> to vector<128x128xf32>
    %16 = arith.mulf %14, %15 : vector<128x128xf32>
    %17 = arith.addf %11, %16 : vector<128x128xf32>
    %18 = vector.broadcast %1 : vector<128x1xf32> to vector<128x128xf32>
    %19 = vector.broadcast %3 : vector<1x128xf32> to vector<128x128xf32>
    %20 = arith.mulf %18, %19 : vector<128x128xf32>
    %21 = arith.addf %17, %20 : vector<128x128xf32>
    %cst = arith.constant 0.000000e+00 : f32
    %22 = vector.broadcast %cst : f32 to vector<128x128xf32>
    %23 = arith.maximumf %21, %22 : vector<128x128xf32>
    %c0_9 = arith.constant 0 : index
    %c0_10 = arith.constant 0 : index
    %24 = vector.load %arg6[%c0_9, %c0_10] : memref<128x128xf32, #tpu.memory_space<vmem>>, vector<128x128xf32>
    %c0_11 = arith.constant 0 : index
    %c0_12 = arith.constant 0 : index
    %25 = vector.load %arg7[%c0_11, %c0_12] : memref<1x128xf32, #tpu.memory_space<vmem>>, vector<1x128xf32>
    %cst_13 = arith.constant dense<0.000000e+00> : vector<128x128xf32>
    %26 = tpu.matmul %23, %24, %cst_13 {dimension_numbers = #tpu.dot_dimension_numbers<[1], [0], [0], [1], [0, 0, 1, 1], [], []>} : vector<128x128xf32>, vector<128x128xf32>, vector<128x128xf32> -> vector<128x128xf32>
    %27 = vector.broadcast %25 : vector<1x128xf32> to vector<128x128xf32>
    %28 = arith.addf %26, %27 : vector<128x128xf32>
    %cst_14 = arith.constant 0.000000e+00 : f32
    %29 = vector.broadcast %cst_14 : f32 to vector<128x128xf32>
    %30 = arith.maximumf %28, %29 : vector<128x128xf32>
    %c0_15 = arith.constant 0 : index
    %c0_16 = arith.constant 0 : index
    %31 = vector.load %arg8[%c0_15, %c0_16] : memref<8x128xf32, #tpu.memory_space<vmem>>, vector<8x128xf32>
    %cst_17 = arith.constant dense<0.000000e+00> : vector<8x128xf32>
    %32 = tpu.matmul %31, %30, %cst_17 {dimension_numbers = #tpu.dot_dimension_numbers<[1], [1], [0], [0], [0, 0, 1, 0], [], []>} : vector<8x128xf32>, vector<128x128xf32>, vector<8x128xf32> -> vector<8x128xf32>
    %c0_18 = arith.constant 0 : index
    %c0_19 = arith.constant 0 : index
    %33 = vector.load %arg9[%c0_18, %c0_19] : memref<8x1xf32, #tpu.memory_space<vmem>>, vector<8x1xf32>
    %34 = vector.broadcast %33 : vector<8x1xf32> to vector<8x128xf32>
    %35 = arith.addf %32, %34 : vector<8x128xf32>
    %c0_20 = arith.constant 0 : index
    %c0_21 = arith.constant 0 : index
    %36 = vector.load %arg10[%c0_20, %c0_21] : memref<8x128xf32, #tpu.memory_space<vmem>>, vector<8x128xf32>
    tpu.vector_store %arg10[%c0_20, %c0_21], %35 {strides = array<i32>} : memref<8x128xf32, #tpu.memory_space<vmem>>, vector<8x128xf32>,
    return
  }
  func.func @transform_0(%arg0: i32) -> (i32, i32) {
    %c0_i32 = arith.constant 0 : i32
    %c0_i32_0 = arith.constant 0 : i32
    return %arg0, %c0_i32 : i32, i32
  }
  func.func @transform_1(%arg0: i32) -> (i32, i32) {
    %c0_i32 = arith.constant 0 : i32
    %c0_i32_0 = arith.constant 0 : i32
    return %arg0, %c0_i32 : i32, i32
  }
  func.func @transform_2(%arg0: i32) -> (i32, i32) {
    %c0_i32 = arith.constant 0 : i32
    %c0_i32_0 = arith.constant 0 : i32
    %c0_i32_1 = arith.constant 0 : i32
    return %c0_i32, %c0_i32_0 : i32, i32
  }
  func.func @transform_3(%arg0: i32) -> (i32, i32) {
    %c0_i32 = arith.constant 0 : i32
    %c0_i32_0 = arith.constant 0 : i32
    %c0_i32_1 = arith.constant 0 : i32
    return %c0_i32, %c0_i32_0 : i32, i32
  }
  func.func @transform_4(%arg0: i32) -> (i32, i32) {
    %c0_i32 = arith.constant 0 : i32
    %c0_i32_0 = arith.constant 0 : i32
    %c0_i32_1 = arith.constant 0 : i32
    return %c0_i32, %c0_i32_0 : i32, i32
  }
  func.func @transform_5(%arg0: i32) -> (i32, i32) {
    %c0_i32 = arith.constant 0 : i32
    %c0_i32_0 = arith.constant 0 : i32
    %c0_i32_1 = arith.constant 0 : i32
    return %c0_i32, %c0_i32_0 : i32, i32
  }
  func.func @transform_6(%arg0: i32) -> (i32, i32) {
    %c0_i32 = arith.constant 0 : i32
    %c0_i32_0 = arith.constant 0 : i32
    %c0_i32_1 = arith.constant 0 : i32
    return %c0_i32, %c0_i32_0 : i32, i32
  }
  func.func @transform_7(%arg0: i32) -> (i32, i32) {
    %c0_i32 = arith.constant 0 : i32
    %c0_i32_0 = arith.constant 0 : i32
    %c0_i32_1 = arith.constant 0 : i32
    return %c0_i32, %c0_i32_0 : i32, i32
  }
  func.func @transform_8(%arg0: i32) -> (i32, i32) {
    %c0_i32 = arith.constant 0 : i32
    %c0_i32_0 = arith.constant 0 : i32
    %c0_i32_1 = arith.constant 0 : i32
    return %c0_i32, %c0_i32_0 : i32, i32
  }
  func.func @transform_9(%arg0: i32) -> (i32, i32) {
    %c0_i32 = arith.constant 0 : i32
    %c0_i32_0 = arith.constant 0 : i32
    return %c0_i32, %arg0 : i32, i32
  }
}

</mosaic_0001>

<llo_original>
// kernel: _lambda_.1
$region0: #{_lambda_.1}
  #allocation0 [shape = 'u32[]', space=smem, size = 0x4, offset = 0x4, fixed_abs, tag = 'smem constant byte address 0x4 - core index']
  #allocation1 [shape = 'u32[144,128]{1,0:T(1,128)}', space=vmem, size = 0x12000, scoped, tag = 'internal scratch']
  %s0 = inlined_call_operand.vmem [shape: f32[256,2], index: 0, kind: input, shape index: {}]
  %s1 = inlined_call_operand.vmem [shape: f32[256,1], index: 1, kind: input, shape index: {}]
  %s2 = inlined_call_operand.vmem [shape: f32[2,128], index: 2, kind: input, shape index: {}]
  %s3 = inlined_call_operand.vmem [shape: f32[1,128], index: 3, kind: input, shape index: {}]
  %s4 = inlined_call_operand.vmem [shape: f32[1,128], index: 4, kind: input, shape index: {}]
  %s5 = inlined_call_operand.vmem [shape: f32[128,128], index: 5, kind: input, shape index: {}]
  %s6 = inlined_call_operand.vmem [shape: f32[1,128], index: 6, kind: input, shape index: {}]
  %s7 = inlined_call_operand.vmem [shape: f32[8,128], index: 7, kind: input, shape index: {}]
  %s8 = inlined_call_operand.vmem [shape: f32[8,1], index: 8, kind: input, shape index: {}]
  %s9 = inlined_call_operand.vmem [shape: f32[8,256], index: 9, kind: output, shape index: {}]
  %s10 = sld [smem:[#allocation0]]
  $region69: #{_lambda_.1} parent=0
    _
  %s12 = ssub.s32 1, %s10
  %s13 = scalar_select 0, %s12, %s10
  loop: start=0, step=1, limit=4
  $region2: #{_lambda_.1} parent=0 // loop_pre_header
    _
  $region3: #{_lambda_.1} parent=0 // loop_header
    %s15 = sphi 0, %s19
    %p16 = scmp.ge.s32.totalorder %s15, 4
    %s25 = sphi 0, %s27
    %s28 = sphi 0, %s25
    %s29 = sphi 0, %s28
    %s45 = sphi 0, %s29
    %s51 = sphi 0, %s53
    %s54 = sphi 0, %s51
    %s55 = sphi 0, %s54
    %s71 = sphi 0, %s55
    %s75 = sphi 0, %s75
    %s77 = sphi 0, %s75
    %s78 = sphi 0, %s77
    %s92 = sphi 0, %s78
    %s96 = sphi 0, %s96
    %s98 = sphi 0, %s96
    %s99 = sphi 0, %s98
    %s113 = sphi 0, %s99
    %s117 = sphi 0, %s117
    %s119 = sphi 0, %s117
    %s120 = sphi 0, %s119
    %s134 = sphi 0, %s120
    %s138 = sphi 0, %s138
    %s140 = sphi 0, %s138
    %s141 = sphi 0, %s140
    %s155 = sphi 0, %s141
    %s159 = sphi 0, %s159
    %s161 = sphi 0, %s159
    %s162 = sphi 0, %s161
    %s176 = sphi 0, %s162
    %s180 = sphi 0, %s180
    %s182 = sphi 0, %s180
    %s183 = sphi 0, %s182
    %s197 = sphi 0, %s183
    %s201 = sphi 0, %s201
    %s203 = sphi 0, %s201
    %s204 = sphi 0, %s203
    %s218 = sphi 0, %s204
    %s224 = sphi 0, %s226
    %s227 = sphi 0, %s224
    %s228 = sphi 0, %s227
    %s244 = sphi 0, %s228
  $region4: #{_lambda_.1} parent=0 // loop_header_branch
    %18 = sbr.rel (%p16) target = $region8
  $region5: #{_lambda_.1} parent=0 // loop_body
    %s20 = ssub.s32 %s15, 1
    %s21 = ssub.s32 %s15, 2
    %s22 = sadd.s32 %s15, 1
    %s23 = ssub.s32 %s15, %s22
    %p24 = scmp.eq.s32.totalorder %s23, 0
    %s26 = sadd.s32 %s25, 1
    %s27 = scalar_select %p24, %s25, %s26
    %p30 = pneg %p24
    %p31 = scmp.eq.s32.totalorder %s15, 1
    %p32 = por %p30, %p31
    %p33 = scmp.ne.s32.totalorder %s25, %s28
    %p34 = scmp.eq.s32.totalorder %s15, 0
    %p35 = por %p33, %p34
    %p36 = scmp.ne.s32.totalorder %s25, %s28
    %p37 = scmp.eq.s32.totalorder %s20, 1
    %p38 = por %p36, %p37
    %p39 = scmp.ne.s32.totalorder %s28, %s29
    %p40 = scmp.eq.s32.totalorder %s20, 0
    %p41 = por %p39, %p40
    %p42 = scmp.ne.s32.totalorder %s28, %s29
    %p43 = scmp.eq.s32.totalorder %s21, 1
    %p44 = por %p42, %p43
    %p46 = scmp.ne.s32.totalorder %s29, %s45
    %p47 = scmp.eq.s32.totalorder %s21, 0
    %p48 = por %p46, %p47
    %s49 = ssub.s32 %s15, %s22
    %p50 = scmp.eq.s32.totalorder %s49, 0
    %s52 = sadd.s32 %s51, 1
    %s53 = scalar_select %p50, %s51, %s52
    %p56 = pneg %p50
    %p57 = scmp.eq.s32.totalorder %s15, 1
    %p58 = por %p56, %p57
    %p59 = scmp.ne.s32.totalorder %s51, %s54
    %p60 = scmp.eq.s32.totalorder %s15, 0
    %p61 = por %p59, %p60
    %p62 = scmp.ne.s32.totalorder %s51, %s54
    %p63 = scmp.eq.s32.totalorder %s20, 1
    %p64 = por %p62, %p63
    %p65 = scmp.ne.s32.totalorder %s54, %s55
    %p66 = scmp.eq.s32.totalorder %s20, 0
    %p67 = por %p65, %p66
    %p68 = scmp.ne.s32.totalorder %s54, %s55
    %p69 = scmp.eq.s32.totalorder %s21, 1
    %p70 = por %p68, %p69
    %p72 = scmp.ne.s32.totalorder %s55, %s71
    %p73 = scmp.eq.s32.totalorder %s21, 0
    %p74 = por %p72, %p73
    %s76 = sadd.s32 %s75, 1
    %p79 = scmp.eq.s32.totalorder %s15, 1
    %p80 = scmp.ne.s32.totalorder %s75, %s77
    %p81 = scmp.eq.s32.totalorder %s15, 0
    %p82 = por %p80, %p81
    %p83 = scmp.ne.s32.totalorder %s75, %s77
    %p84 = scmp.eq.s32.totalorder %s20, 1
    %p85 = por %p83, %p84
    %p86 = scmp.ne.s32.totalorder %s77, %s78
    %p87 = scmp.eq.s32.totalorder %s20, 0
    %p88 = por %p86, %p87
    %p89 = scmp.ne.s32.totalorder %s77, %s78
    %p90 = scmp.eq.s32.totalorder %s21, 1
    %p91 = por %p89, %p90
    %p93 = scmp.ne.s32.totalorder %s78, %s92
    %p94 = scmp.eq.s32.totalorder %s21, 0
    %p95 = por %p93, %p94
    %s97 = sadd.s32 %s96, 1
    %p100 = scmp.eq.s32.totalorder %s15, 1
    %p101 = scmp.ne.s32.totalorder %s96, %s98
    %p102 = scmp.eq.s32.totalorder %s15, 0
    %p103 = por %p101, %p102
    %p104 = scmp.ne.s32.totalorder %s96, %s98
    %p105 = scmp.eq.s32.totalorder %s20, 1
    %p106 = por %p104, %p105
    %p107 = scmp.ne.s32.totalorder %s98, %s99
    %p108 = scmp.eq.s32.totalorder %s20, 0
    %p109 = por %p107, %p108
    %p110 = scmp.ne.s32.totalorder %s98, %s99
    %p111 = scmp.eq.s32.totalorder %s21, 1
    %p112 = por %p110, %p111
    %p114 = scmp.ne.s32.totalorder %s99, %s113
    %p115 = scmp.eq.s32.totalorder %s21, 0
    %p116 = por %p114, %p115
    %s118 = sadd.s32 %s117, 1
    %p121 = scmp.eq.s32.totalorder %s15, 1
    %p122 = scmp.ne.s32.totalorder %s117, %s119
    %p123 = scmp.eq.s32.totalorder %s15, 0
    %p124 = por %p122, %p123
    %p125 = scmp.ne.s32.totalorder %s117, %s119
    %p126 = scmp.eq.s32.totalorder %s20, 1
    %p127 = por %p125, %p126
    %p128 = scmp.ne.s32.totalorder %s119, %s120
    %p129 = scmp.eq.s32.totalorder %s20, 0
    %p130 = por %p128, %p129
    %p131 = scmp.ne.s32.totalorder %s119, %s120
    %p132 = scmp.eq.s32.totalorder %s21, 1
    %p133 = por %p131, %p132
    %p135 = scmp.ne.s32.totalorder %s120, %s134
    %p136 = scmp.eq.s32.totalorder %s21, 0
    %p137 = por %p135, %p136
    %s139 = sadd.s32 %s138, 1
    %p142 = scmp.eq.s32.totalorder %s15, 1
    %p143 = scmp.ne.s32.totalorder %s138, %s140
    %p144 = scmp.eq.s32.totalorder %s15, 0
    %p145 = por %p143, %p144
    %p146 = scmp.ne.s32.totalorder %s138, %s140
    %p147 = scmp.eq.s32.totalorder %s20, 1
    %p148 = por %p146, %p147
    %p149 = scmp.ne.s32.totalorder %s140, %s141
    %p150 = scmp.eq.s32.totalorder %s20, 0
    %p151 = por %p149, %p150
    %p152 = scmp.ne.s32.totalorder %s140, %s141
    %p153 = scmp.eq.s32.totalorder %s21, 1
    %p154 = por %p152, %p153
    %p156 = scmp.ne.s32.totalorder %s141, %s155
    %p157 = scmp.eq.s32.totalorder %s21, 0
    %p158 = por %p156, %p157
    %s160 = sadd.s32 %s159, 1
    %p163 = scmp.eq.s32.totalorder %s15, 1
    %p164 = scmp.ne.s32.totalorder %s159, %s161
    %p165 = scmp.eq.s32.totalorder %s15, 0
    %p166 = por %p164, %p165
    %p167 = scmp.ne.s32.totalorder %s159, %s161
    %p168 = scmp.eq.s32.totalorder %s20, 1
    %p169 = por %p167, %p168
    %p170 = scmp.ne.s32.totalorder %s161, %s162
    %p171 = scmp.eq.s32.totalorder %s20, 0
    %p172 = por %p170, %p171
    %p173 = scmp.ne.s32.totalorder %s161, %s162
    %p174 = scmp.eq.s32.totalorder %s21, 1
    %p175 = por %p173, %p174
    %p177 = scmp.ne.s32.totalorder %s162, %s176
    %p178 = scmp.eq.s32.totalorder %s21, 0
    %p179 = por %p177, %p178
    %s181 = sadd.s32 %s180, 1
    %p184 = scmp.eq.s32.totalorder %s15, 1
    %p185 = scmp.ne.s32.totalorder %s180, %s182
    %p186 = scmp.eq.s32.totalorder %s15, 0
    %p187 = por %p185, %p186
    %p188 = scmp.ne.s32.totalorder %s180, %s182
    %p189 = scmp.eq.s32.totalorder %s20, 1
    %p190 = por %p188, %p189
    %p191 = scmp.ne.s32.totalorder %s182, %s183
    %p192 = scmp.eq.s32.totalorder %s20, 0
    %p193 = por %p191, %p192
    %p194 = scmp.ne.s32.totalorder %s182, %s183
    %p195 = scmp.eq.s32.totalorder %s21, 1
    %p196 = por %p194, %p195
    %p198 = scmp.ne.s32.totalorder %s183, %s197
    %p199 = scmp.eq.s32.totalorder %s21, 0
    %p200 = por %p198, %p199
    %s202 = sadd.s32 %s201, 1
    %p205 = scmp.eq.s32.totalorder %s15, 1
    %p206 = scmp.ne.s32.totalorder %s201, %s203
    %p207 = scmp.eq.s32.totalorder %s15, 0
    %p208 = por %p206, %p207
    %p209 = scmp.ne.s32.totalorder %s201, %s203
    %p210 = scmp.eq.s32.totalorder %s20, 1
    %p211 = por %p209, %p210
    %p212 = scmp.ne.s32.totalorder %s203, %s204
    %p213 = scmp.eq.s32.totalorder %s20, 0
    %p214 = por %p212, %p213
    %p215 = scmp.ne.s32.totalorder %s203, %s204
    %p216 = scmp.eq.s32.totalorder %s21, 1
    %p217 = por %p215, %p216
    %p219 = scmp.ne.s32.totalorder %s204, %s218
    %p220 = scmp.eq.s32.totalorder %s21, 0
    %p221 = por %p219, %p220
    %s222 = ssub.s32 %s15, %s22
    %p223 = scmp.eq.s32.totalorder %s222, 0
    %s225 = sadd.s32 %s224, 1
    %s226 = scalar_select %p223, %s224, %s225
    %p229 = pneg %p223
    %p230 = scmp.eq.s32.totalorder %s15, 1
    %p231 = por %p229, %p230
    %p232 = scmp.ne.s32.totalorder %s224, %s227
    %p233 = scmp.eq.s32.totalorder %s15, 0
    %p234 = por %p232, %p233
    %p235 = scmp.ne.s32.totalorder %s224, %s227
    %p236 = scmp.eq.s32.totalorder %s20, 1
    %p237 = por %p235, %p236
    %p238 = scmp.ne.s32.totalorder %s227, %s228
    %p239 = scmp.eq.s32.totalorder %s20, 0
    %p240 = por %p238, %p239
    %p241 = scmp.ne.s32.totalorder %s227, %s228
    %p242 = scmp.eq.s32.totalorder %s21, 1
    %p243 = por %p241, %p242
    %p245 = scmp.ne.s32.totalorder %s228, %s244
    %p246 = scmp.eq.s32.totalorder %s21, 0
    %p247 = por %p245, %p246
    %p248 = scmp.le.s32.totalorder 1, %s15
    %p249 = scmp.lt.s32.totalorder %s15, 3
    %p250 = pnand %p248, %p249
    %p251 = pneg %p250
    // Predicated region
    $region9: #{_lambda_.1} parent=5 // pred_check
      _
    $region10: #{_lambda_.1} parent=5 // pred_check_branch
      %253 = sbr.rel (%p250) target = $region12
    $region11: #{_lambda_.1} parent=5 // pred_region
      %s254 = ssub.s32 %s15, 1
      // Predicated region
      $region13: #{_lambda_.1} parent=11 // pred_check
        %p255 = pneg %p88
      $region14: #{_lambda_.1} parent=11 // pred_check_branch
        %257 = sbr.rel (%p255) target = $region16
      $region15: #{_lambda_.1} parent=11 // pred_region
        _
      $region16: #{_lambda_.1} parent=11 // pred_fallthru
        _
      // Predicated region
      $region17: #{_lambda_.1} parent=11 // pred_check
        %p258 = pneg %p109
      $region18: #{_lambda_.1} parent=11 // pred_check_branch
        %260 = sbr.rel (%p258) target = $region20
      $region19: #{_lambda_.1} parent=11 // pred_region
        _
      $region20: #{_lambda_.1} parent=11 // pred_fallthru
        _
      // Predicated region
      $region21: #{_lambda_.1} parent=11 // pred_check
        %p261 = pneg %p130
      $region22: #{_lambda_.1} parent=11 // pred_check_branch
        %263 = sbr.rel (%p261) target = $region24
      $region23: #{_lambda_.1} parent=11 // pred_region
        _
      $region24: #{_lambda_.1} parent=11 // pred_fallthru
        _
      // Predicated region
      $region25: #{_lambda_.1} parent=11 // pred_check
        %p264 = pneg %p151
      $region26: #{_lambda_.1} parent=11 // pred_check_branch
        %266 = sbr.rel (%p264) target = $region28
      $region27: #{_lambda_.1} parent=11 // pred_region
        _
      $region28: #{_lambda_.1} parent=11 // pred_fallthru
        _
      // Predicated region
      $region29: #{_lambda_.1} parent=11 // pred_check
        %p267 = pneg %p172
      $region30: #{_lambda_.1} parent=11 // pred_check_branch
        %269 = sbr.rel (%p267) target = $region32
      $region31: #{_lambda_.1} parent=11 // pred_region
        _
      $region32: #{_lambda_.1} parent=11 // pred_fallthru
        _
      // Predicated region
      $region33: #{_lambda_.1} parent=11 // pred_check
        %p270 = pneg %p193
      $region34: #{_lambda_.1} parent=11 // pred_check_branch
        %272 = sbr.rel (%p270) target = $region36
      $region35: #{_lambda_.1} parent=11 // pred_region
        _
      $region36: #{_lambda_.1} parent=11 // pred_fallthru
        _
      // Predicated region
      $region37: #{_lambda_.1} parent=11 // pred_check
        %p273 = pneg %p214
      $region38: #{_lambda_.1} parent=11 // pred_check_branch
        %275 = sbr.rel (%p273) target = $region40
      $region39: #{_lambda_.1} parent=11 // pred_region
        _
      $region40: #{_lambda_.1} parent=11 // pred_fallthru
        _
    $region12: #{_lambda_.1} parent=5 // pred_fallthru
      _
    %p276 = scmp.lt.s32.totalorder %s15, 2
    // Predicated region
    $region41: #{_lambda_.1} parent=5 // pred_check
      %p277 = pneg %p276
    $region42: #{_lambda_.1} parent=5 // pred_check_branch
      %279 = sbr.rel (%p277) target = $region44
    $region43: #{_lambda_.1} parent=5 // pred_region
      // Predicated region
      $region45: #{_lambda_.1} parent=43 // pred_check
        %p280 = pneg %p35
      $region46: #{_lambda_.1} parent=43 // pred_check_branch
        %282 = sbr.rel (%p280) target = $region48
      $region47: #{_lambda_.1} parent=43 // pred_region
        %s283 = smul.u32 16, %s15
        %p284 = scmp.lt.s32.totalorder %s283, 31
        %s285 = scalar_select %p284, %s283, 31
        %s286 = smul.addr %s285, 8
        %s287 = scalar_lea.vmem %s0, %s286
        %s288 = smul.u32 16, %s15
      $region48: #{_lambda_.1} parent=43 // pred_fallthru
        _
      // Predicated region
      $region49: #{_lambda_.1} parent=43 // pred_check
        %p289 = pneg %p61
      $region50: #{_lambda_.1} parent=43 // pred_check_branch
        %291 = sbr.rel (%p289) target = $region52
      $region51: #{_lambda_.1} parent=43 // pred_region
        %s292 = smul.u32 16, %s15
        %p293 = scmp.lt.s32.totalorder %s292, 31
        %s294 = scalar_select %p293, %s292, 31
        %s295 = smul.addr %s294, 8
        %s296 = scalar_lea.vmem %s1, %s295
        %s297 = smul.u32 16, %s15
      $region52: #{_lambda_.1} parent=43 // pred_fallthru
        _
    $region44: #{_lambda_.1} parent=5 // pred_fallthru
      _
    %p298 = scmp.le.s32.totalorder 1, %s15
    %p299 = scmp.lt.s32.totalorder %s15, 3
    %p300 = pnand %p298, %p299
    %p301 = pneg %p300
    // Predicated region
    $region53: #{_lambda_.1} parent=5 // pred_check
      _
    $region54: #{_lambda_.1} parent=5 // pred_check_branch
      %303 = sbr.rel (%p300) target = $region56
    $region55: #{_lambda_.1} parent=5 // pred_region
      %s304 = ssub.s32 %s15, 1
      %s305 = smul.u32 16, %s20
      %p306 = scmp.lt.s32.totalorder %s305, 31
      %s307 = scalar_select %p306, %s305, 31
      %s308 = smul.addr %s307, 8
      %s309 = scalar_lea.vmem %s0, %s308
      %p310 = pneg %p41
      %p311 = pneg %p38
      %s312 = smul.u32 16, %s20
      %p313 = scmp.lt.s32.totalorder %s312, 31
      %s314 = scalar_select %p313, %s312, 31
      %s315 = smul.addr %s314, 8
      %s316 = scalar_lea.vmem %s1, %s315
      %p317 = pneg %p67
      %p318 = pneg %p64
      %p319 = pneg %p88
      %p320 = pneg %p85
      %p321 = pneg %p109
      %p322 = pneg %p106
      %p323 = pneg %p130
      %p324 = pneg %p127
      %p325 = pneg %p151
      %p326 = pneg %p148
      %p327 = pneg %p172
      %p328 = pneg %p169
      %p329 = pneg %p193
      %p330 = pneg %p190
      %p331 = pneg %p214
      %p332 = pneg %p211
      %p333 = pneg %p240
      %p334 = pneg %p237
      %p335 = scmp.lt.s32.totalorder %s20, 1
      %s336 = scalar_select %p335, %s20, 1
      %s337 = smul.addr %s336, 8
      %s338 = scalar_lea.vmem %s9, %s337
      %s339 = smul.u32 16, %s20
      %p340 = scmp.lt.s32.totalorder %s339, 31
      %s341 = scalar_select %p340, %s339, 31
      %s342 = smul.addr %s341, 8
      %s343 = scalar_lea.vmem %s0, %s342
      %s344 = smul.u32 16, %s20
      %s345 = smul.u32 16, %s20
      %p346 = scmp.lt.s32.totalorder %s345, 31
      %s347 = scalar_select %p346, %s345, 31
      %s348 = smul.addr %s347, 8
      %s349 = scalar_lea.vmem %s1, %s348
      %s350 = smul.u32 16, %s20
      %p351 = scmp.lt.s32.totalorder %s20, 1
      %s352 = scalar_select %p351, %s20, 1
      %s353 = smul.addr %s352, 8
      %s354 = scalar_lea.vmem %s9, %s353
      %v355 = vld [vmem:[%s343] sm:$0xff]
      %v356 = vld [vmem:[%s343 + $0x8] sm:$0xff]
      %v357 = vld [vmem:[%s343 + $0x10] sm:$0xff]
      %v358 = vld [vmem:[%s343 + $0x18] sm:$0xff]
      %v359 = vld [vmem:[%s343 + $0x20] sm:$0xff]
      %v360 = vld [vmem:[%s343 + $0x28] sm:$0xff]
      %v361 = vld [vmem:[%s343 + $0x30] sm:$0xff]
      %v362 = vld [vmem:[%s343 + $0x38] sm:$0xff]
      %v363 = vld [vmem:[%s343 + $0x40] sm:$0xff]
      %v364 = vld [vmem:[%s343 + $0x48] sm:$0xff]
      %v365 = vld [vmem:[%s343 + $0x50] sm:$0xff]
      %v366 = vld [vmem:[%s343 + $0x58] sm:$0xff]
      %v367 = vld [vmem:[%s343 + $0x60] sm:$0xff]
      %v368 = vld [vmem:[%s343 + $0x68] sm:$0xff]
      %v369 = vld [vmem:[%s343 + $0x70] sm:$0xff]
      %v370 = vld [vmem:[%s343 + $0x78] sm:$0xff]
      %v371 = vld [vmem:[%s349] sm:$0xff]
      %v372 = vld [vmem:[%s349 + $0x8] sm:$0xff]
      %v373 = vld [vmem:[%s349 + $0x10] sm:$0xff]
      %v374 = vld [vmem:[%s349 + $0x18] sm:$0xff]
      %v375 = vld [vmem:[%s349 + $0x20] sm:$0xff]
      %v376 = vld [vmem:[%s349 + $0x28] sm:$0xff]
      %v377 = vld [vmem:[%s349 + $0x30] sm:$0xff]
      %v378 = vld [vmem:[%s349 + $0x38] sm:$0xff]
      %v379 = vld [vmem:[%s349 + $0x40] sm:$0xff]
      %v380 = vld [vmem:[%s349 + $0x48] sm:$0xff]
      %v381 = vld [vmem:[%s349 + $0x50] sm:$0xff]
      %v382 = vld [vmem:[%s349 + $0x58] sm:$0xff]
      %v383 = vld [vmem:[%s349 + $0x60] sm:$0xff]
      %v384 = vld [vmem:[%s349 + $0x68] sm:$0xff]
      %v385 = vld [vmem:[%s349 + $0x70] sm:$0xff]
      %v386 = vld [vmem:[%s349 + $0x78] sm:$0xff]
      %v387 = vld [vmem:[%s2] sm:$0x3]
      %v388 = vld [vmem:[%s3] sm:$0x1]
      %v389 = vld [vmem:[%s4] sm:$0x1]
      %391 = vset.pattern.permute.xlu0 0
      %392 = vperm.xlu0 %391, %v355
      %v393 = vpop.permute.xlu0 %392
      %396 = vset.pattern.permute.xlu0 0
      %397 = vperm.xlu0 %396, %v356
      %v398 = vpop.permute.xlu0 %397
      %401 = vset.pattern.permute.xlu0 0
      %402 = vperm.xlu0 %401, %v357
      %v403 = vpop.permute.xlu0 %402
      %406 = vset.pattern.permute.xlu0 0
      %407 = vperm.xlu0 %406, %v358
      %v408 = vpop.permute.xlu0 %407
      %411 = vset.pattern.permute.xlu0 0
      %412 = vperm.xlu0 %411, %v359
      %v413 = vpop.permute.xlu0 %412
      %416 = vset.pattern.permute.xlu0 0
      %417 = vperm.xlu0 %416, %v360
      %v418 = vpop.permute.xlu0 %417
      %421 = vset.pattern.permute.xlu0 0
      %422 = vperm.xlu0 %421, %v361
      %v423 = vpop.permute.xlu0 %422
      %426 = vset.pattern.permute.xlu0 0
      %427 = vperm.xlu0 %426, %v362
      %v428 = vpop.permute.xlu0 %427
      %431 = vset.pattern.permute.xlu0 0
      %432 = vperm.xlu0 %431, %v363
      %v433 = vpop.permute.xlu0 %432
      %436 = vset.pattern.permute.xlu0 0
      %437 = vperm.xlu0 %436, %v364
      %v438 = vpop.permute.xlu0 %437
      %441 = vset.pattern.permute.xlu0 0
      %442 = vperm.xlu0 %441, %v365
      %v443 = vpop.permute.xlu0 %442
      %446 = vset.pattern.permute.xlu0 0
      %447 = vperm.xlu0 %446, %v366
      %v448 = vpop.permute.xlu0 %447
      %451 = vset.pattern.permute.xlu0 0
      %452 = vperm.xlu0 %451, %v367
      %v453 = vpop.permute.xlu0 %452
      %456 = vset.pattern.permute.xlu0 0
      %457 = vperm.xlu0 %456, %v368
      %v458 = vpop.permute.xlu0 %457
      %461 = vset.pattern.permute.xlu0 0
      %462 = vperm.xlu0 %461, %v369
      %v463 = vpop.permute.xlu0 %462
      %466 = vset.pattern.permute.xlu0 0
      %467 = vperm.xlu0 %466, %v370
      %v468 = vpop.permute.xlu0 %467
      %v470 = vlaneseq
      %v471 = vshrl.u32 %v470, 7
      %v472 = vsub.s32 0, %v471
      %v473 = vrot.slane %v387, %v472
      %v474 = vmul.f32 %v393, %v473
      %v475 = vmul.f32 %v398, %v473
      %v476 = vmul.f32 %v403, %v473
      %v477 = vmul.f32 %v408, %v473
      %v478 = vmul.f32 %v413, %v473
      %v479 = vmul.f32 %v418, %v473
      %v480 = vmul.f32 %v423, %v473
      %v481 = vmul.f32 %v428, %v473
      %v482 = vmul.f32 %v433, %v473
      %v483 = vmul.f32 %v438, %v473
      %v484 = vmul.f32 %v443, %v473
      %v485 = vmul.f32 %v448, %v473
      %v486 = vmul.f32 %v453, %v473
      %v487 = vmul.f32 %v458, %v473
      %v488 = vmul.f32 %v463, %v473
      %v489 = vmul.f32 %v468, %v473
      %v491 = vlaneseq
      %v492 = vshrl.u32 %v491, 7
      %v493 = vsub.s32 0, %v492
      %v494 = vrot.slane %v389, %v493
      %v496 = vadd.f32 %v494, %v474
      %v497 = vadd.f32 %v494, %v475
      %v498 = vadd.f32 %v494, %v476
      %v499 = vadd.f32 %v494, %v477
      %v500 = vadd.f32 %v494, %v478
      %v501 = vadd.f32 %v494, %v479
      %v502 = vadd.f32 %v494, %v480
      %v503 = vadd.f32 %v494, %v481
      %v504 = vadd.f32 %v494, %v482
      %v505 = vadd.f32 %v494, %v483
      %v506 = vadd.f32 %v494, %v484
      %v507 = vadd.f32 %v494, %v485
      %v508 = vadd.f32 %v494, %v486
      %v509 = vadd.f32 %v494, %v487
      %v510 = vadd.f32 %v494, %v488
      %v511 = vadd.f32 %v494, %v489
      %512 = vset.pattern.permute.xlu0 1
      %513 = vperm.xlu0 %512, %v355
      %v514 = vpop.permute.xlu0 %513
      %516 = vset.pattern.permute.xlu0 1
      %517 = vperm.xlu0 %516, %v356
      %v518 = vpop.permute.xlu0 %517
      %520 = vset.pattern.permute.xlu0 1
      %521 = vperm.xlu0 %520, %v357
      %v522 = vpop.permute.xlu0 %521
      %524 = vset.pattern.permute.xlu0 1
      %525 = vperm.xlu0 %524, %v358
      %v526 = vpop.permute.xlu0 %525
      %528 = vset.pattern.permute.xlu0 1
      %529 = vperm.xlu0 %528, %v359
      %v530 = vpop.permute.xlu0 %529
      %532 = vset.pattern.permute.xlu0 1
      %533 = vperm.xlu0 %532, %v360
      %v534 = vpop.permute.xlu0 %533
      %536 = vset.pattern.permute.xlu0 1
      %537 = vperm.xlu0 %536, %v361
      %v538 = vpop.permute.xlu0 %537
      %540 = vset.pattern.permute.xlu0 1
      %541 = vperm.xlu0 %540, %v362
      %v542 = vpop.permute.xlu0 %541
      %544 = vset.pattern.permute.xlu0 1
      %545 = vperm.xlu0 %544, %v363
      %v546 = vpop.permute.xlu0 %545
      %548 = vset.pattern.permute.xlu0 1
      %549 = vperm.xlu0 %548, %v364
      %v550 = vpop.permute.xlu0 %549
      %552 = vset.pattern.permute.xlu0 1
      %553 = vperm.xlu0 %552, %v365
      %v554 = vpop.permute.xlu0 %553
      %556 = vset.pattern.permute.xlu0 1
      %557 = vperm.xlu0 %556, %v366
      %v558 = vpop.permute.xlu0 %557
      %560 = vset.pattern.permute.xlu0 1
      %561 = vperm.xlu0 %560, %v367
      %v562 = vpop.permute.xlu0 %561
      %564 = vset.pattern.permute.xlu0 1
      %565 = vperm.xlu0 %564, %v368
      %v566 = vpop.permute.xlu0 %565
      %568 = vset.pattern.permute.xlu0 1
      %569 = vperm.xlu0 %568, %v369
      %v570 = vpop.permute.xlu0 %569
      %572 = vset.pattern.permute.xlu0 1
      %573 = vperm.xlu0 %572, %v370
      %v574 = vpop.permute.xlu0 %573
      %v576 = vlaneseq
      %v577 = vshrl.u32 %v576, 7
      %v578 = vsub.s32 1, %v577
      %v579 = vrot.slane %v387, %v578
      %v580 = vmul.f32 %v514, %v579
      %v581 = vmul.f32 %v518, %v579
      %v582 = vmul.f32 %v522, %v579
      %v583 = vmul.f32 %v526, %v579
      %v584 = vmul.f32 %v530, %v579
      %v585 = vmul.f32 %v534, %v579
      %v586 = vmul.f32 %v538, %v579
      %v587 = vmul.f32 %v542, %v579
      %v588 = vmul.f32 %v546, %v579
      %v589 = vmul.f32 %v550, %v579
      %v590 = vmul.f32 %v554, %v579
      %v591 = vmul.f32 %v558, %v579
      %v592 = vmul.f32 %v562, %v579
      %v593 = vmul.f32 %v566, %v579
      %v594 = vmul.f32 %v570, %v579
      %v595 = vmul.f32 %v574, %v579
      %v596 = vadd.f32 %v496, %v580
      %v597 = vadd.f32 %v497, %v581
      %v598 = vadd.f32 %v498, %v582
      %v599 = vadd.f32 %v499, %v583
      %v600 = vadd.f32 %v500, %v584
      %v601 = vadd.f32 %v501, %v585
      %v602 = vadd.f32 %v502, %v586
      %v603 = vadd.f32 %v503, %v587
      %v604 = vadd.f32 %v504, %v588
      %v605 = vadd.f32 %v505, %v589
      %v606 = vadd.f32 %v506, %v590
      %v607 = vadd.f32 %v507, %v591
      %v608 = vadd.f32 %v508, %v592
      %v609 = vadd.f32 %v509, %v593
      %v610 = vadd.f32 %v510, %v594
      %v611 = vadd.f32 %v511, %v595
      %613 = vset.pattern.permute.xlu0 0
      %614 = vperm.xlu0 %613, %v371
      %v615 = vpop.permute.xlu0 %614
      %618 = vset.pattern.permute.xlu0 0
      %619 = vperm.xlu0 %618, %v372
      %v620 = vpop.permute.xlu0 %619
      %623 = vset.pattern.permute.xlu0 0
      %624 = vperm.xlu0 %623, %v373
      %v625 = vpop.permute.xlu0 %624
      %628 = vset.pattern.permute.xlu0 0
      %629 = vperm.xlu0 %628, %v374
      %v630 = vpop.permute.xlu0 %629
      %633 = vset.pattern.permute.xlu0 0
      %634 = vperm.xlu0 %633, %v375
      %v635 = vpop.permute.xlu0 %634
      %638 = vset.pattern.permute.xlu0 0
      %639 = vperm.xlu0 %638, %v376
      %v640 = vpop.permute.xlu0 %639
      %643 = vset.pattern.permute.xlu0 0
      %644 = vperm.xlu0 %643, %v377
      %v645 = vpop.permute.xlu0 %644
      %648 = vset.pattern.permute.xlu0 0
      %649 = vperm.xlu0 %648, %v378
      %v650 = vpop.permute.xlu0 %649
      %653 = vset.pattern.permute.xlu0 0
      %654 = vperm.xlu0 %653, %v379
      %v655 = vpop.permute.xlu0 %654
      %658 = vset.pattern.permute.xlu0 0
      %659 = vperm.xlu0 %658, %v380
      %v660 = vpop.permute.xlu0 %659
      %663 = vset.pattern.permute.xlu0 0
      %664 = vperm.xlu0 %663, %v381
      %v665 = vpop.permute.xlu0 %664
      %668 = vset.pattern.permute.xlu0 0
      %669 = vperm.xlu0 %668, %v382
      %v670 = vpop.permute.xlu0 %669
      %673 = vset.pattern.permute.xlu0 0
      %674 = vperm.xlu0 %673, %v383
      %v675 = vpop.permute.xlu0 %674
      %678 = vset.pattern.permute.xlu0 0
      %679 = vperm.xlu0 %678, %v384
      %v680 = vpop.permute.xlu0 %679
      %683 = vset.pattern.permute.xlu0 0
      %684 = vperm.xlu0 %683, %v385
      %v685 = vpop.permute.xlu0 %684
      %688 = vset.pattern.permute.xlu0 0
      %689 = vperm.xlu0 %688, %v386
      %v690 = vpop.permute.xlu0 %689
      %v693 = vlaneseq
      %v694 = vshrl.u32 %v693, 7
      %v695 = vsub.s32 0, %v694
      %v696 = vrot.slane %v388, %v695
      %v698 = vmul.f32 %v615, %v696
      %v699 = vmul.f32 %v620, %v696
      %v700 = vmul.f32 %v625, %v696
      %v701 = vmul.f32 %v630, %v696
      %v702 = vmul.f32 %v635, %v696
      %v703 = vmul.f32 %v640, %v696
      %v704 = vmul.f32 %v645, %v696
      %v705 = vmul.f32 %v650, %v696
      %v706 = vmul.f32 %v655, %v696
      %v707 = vmul.f32 %v660, %v696
      %v708 = vmul.f32 %v665, %v696
      %v709 = vmul.f32 %v670, %v696
      %v710 = vmul.f32 %v675, %v696
      %v711 = vmul.f32 %v680, %v696
      %v712 = vmul.f32 %v685, %v696
      %v713 = vmul.f32 %v690, %v696
      %v714 = vadd.f32 %v596, %v698
      %v715 = vadd.f32 %v597, %v699
      %v716 = vadd.f32 %v598, %v700
      %v717 = vadd.f32 %v599, %v701
      %v718 = vadd.f32 %v600, %v702
      %v719 = vadd.f32 %v601, %v703
      %v720 = vadd.f32 %v602, %v704
      %v721 = vadd.f32 %v603, %v705
      %v722 = vadd.f32 %v604, %v706
      %v723 = vadd.f32 %v605, %v707
      %v724 = vadd.f32 %v606, %v708
      %v725 = vadd.f32 %v607, %v709
      %v726 = vadd.f32 %v608, %v710
      %v727 = vadd.f32 %v609, %v711
      %v728 = vadd.f32 %v610, %v712
      %v729 = vadd.f32 %v611, %v713
      %v730 = vmax.f32 %v714, 0.0
      %v731 = vmax.f32 %v715, 0.0
      %v732 = vmax.f32 %v716, 0.0
      %v733 = vmax.f32 %v717, 0.0
      %v734 = vmax.f32 %v718, 0.0
      %v735 = vmax.f32 %v719, 0.0
      %v736 = vmax.f32 %v720, 0.0
      %v737 = vmax.f32 %v721, 0.0
      %v738 = vmax.f32 %v722, 0.0
      %v739 = vmax.f32 %v723, 0.0
      %v740 = vmax.f32 %v724, 0.0
      %v741 = vmax.f32 %v725, 0.0
      %v742 = vmax.f32 %v726, 0.0
      %v743 = vmax.f32 %v727, 0.0
      %v744 = vmax.f32 %v728, 0.0
      %v745 = vmax.f32 %v729, 0.0
      %v746 = vld [vmem:[%s5] sm:$0xff]
      %v747 = vld [vmem:[%s5 + $0x8] sm:$0xff]
      %v748 = vld [vmem:[%s5 + $0x10] sm:$0xff]
      %v749 = vld [vmem:[%s5 + $0x18] sm:$0xff]
      %v750 = vld [vmem:[%s5 + $0x20] sm:$0xff]
      %v751 = vld [vmem:[%s5 + $0x28] sm:$0xff]
      %v752 = vld [vmem:[%s5 + $0x30] sm:$0xff]
      %v753 = vld [vmem:[%s5 + $0x38] sm:$0xff]
      %v754 = vld [vmem:[%s5 + $0x40] sm:$0xff]
      %v755 = vld [vmem:[%s5 + $0x48] sm:$0xff]
      %v756 = vld [vmem:[%s5 + $0x50] sm:$0xff]
      %v757 = vld [vmem:[%s5 + $0x58] sm:$0xff]
      %v758 = vld [vmem:[%s5 + $0x60] sm:$0xff]
      %v759 = vld [vmem:[%s5 + $0x68] sm:$0xff]
      %v760 = vld [vmem:[%s5 + $0x70] sm:$0xff]
      %v761 = vld [vmem:[%s5 + $0x78] sm:$0xff]
      %v762 = vld [vmem:[%s6] sm:$0x1]
      %v764 = vlaneseq
      %v765 = vshrl.u32 %v764, 7
      %v766 = vsub.s32 0, %v765
      %v767 = vrot.slane %v762, %v766
      %769 = vmatprep.subr.mxu0 0.0
      %770 = vmatpush1.msra.mxu0 %v746
      %771 = vmatprep.subr.mxu0 0.0
      %772 = vmatpush1.msra.mxu0 %v747
      %773 = vmatprep.subr.mxu0 0.0
      %774 = vmatpush1.msra.mxu0 %v748
      %775 = vmatprep.subr.mxu0 0.0
      %776 = vmatpush1.msra.mxu0 %v749
      %777 = vmatprep.subr.mxu0 0.0
      %778 = vmatpush1.msra.mxu0 %v750
      %779 = vmatprep.subr.mxu0 0.0
      %780 = vmatpush1.msra.mxu0 %v751
      %781 = vmatprep.subr.mxu0 0.0
      %782 = vmatpush1.msra.mxu0 %v752
      %783 = vmatprep.subr.mxu0 0.0
      %784 = vmatpush1.msra.mxu0 %v753
      %785 = vmatprep.subr.mxu0 0.0
      %786 = vmatpush1.msra.mxu0 %v754
      %787 = vmatprep.subr.mxu0 0.0
      %788 = vmatpush1.msra.mxu0 %v755
      %789 = vmatprep.subr.mxu0 0.0
      %790 = vmatpush1.msra.mxu0 %v756
      %791 = vmatprep.subr.mxu0 0.0
      %792 = vmatpush1.msra.mxu0 %v757
      %793 = vmatprep.subr.mxu0 0.0
      %794 = vmatpush1.msra.mxu0 %v758
      %795 = vmatprep.subr.mxu0 0.0
      %796 = vmatpush1.msra.mxu0 %v759
      %797 = vmatprep.subr.mxu0 0.0
      %798 = vmatpush1.msra.mxu0 %v760
      %799 = vmatprep.subr.mxu0 0.0
      %800 = vmatpush1.msra.mxu0 %v761
      %801 = vmatprep.subr.mxu0 0.0
      %802 = vmatpush1.msra.mxu0 0.0
      %803 = vmatprep.subr.mxu0 0.0
      %804 = vmatpush1.msra.mxu0 0.0
      %805 = vmatprep.subr.mxu0 0.0
      %806 = vmatpush1.msra.mxu0 0.0
      %807 = vmatprep.subr.mxu0 0.0
      %808 = vmatpush1.msra.mxu0 0.0
      %809 = vmatprep.subr.mxu0 0.0
      %810 = vmatpush1.msra.mxu0 0.0
      %811 = vmatprep.subr.mxu0 0.0
      %812 = vmatpush1.msra.mxu0 0.0
      %813 = vmatprep.subr.mxu0 0.0
      %814 = vmatpush1.msra.mxu0 0.0
      %815 = vmatprep.subr.mxu0 0.0
      %816 = vmatpush1.msra.mxu0 0.0
      %817 = vmatprep.subr.mxu0 0.0
      %818 = vmatpush1.msra.mxu0 0.0
      %819 = vmatprep.subr.mxu0 0.0
      %820 = vmatpush1.msra.mxu0 0.0
      %821 = vmatprep.subr.mxu0 0.0
      %822 = vmatpush1.msra.mxu0 0.0
      %823 = vmatprep.subr.mxu0 0.0
      %824 = vmatpush1.msra.mxu0 0.0
      %825 = vmatprep.subr.mxu0 0.0
      %826 = vmatpush1.msra.mxu0 0.0
      %827 = vmatprep.subr.mxu0 0.0
      %828 = vmatpush1.msra.mxu0 0.0
      %829 = vmatprep.subr.mxu0 0.0
      %830 = vmatpush1.msra.mxu0 0.0
      %831 = vmatprep.subr.mxu0 0.0
      %832 = vmatpush1.msra.mxu0 0.0
      %833 = vmatprep.mubr.f32.mxu0 0.0
      %834 = vmatmul.mubr.f32.gmra.mrb[0].mxu0 %v730
      %v835 = vpop.f32.mrb[0].mxu0
      %v836 = vadd.f32 %v767, %v835
      %v837 = vpop.f32.mrb[0].mxu0
      %838 = vmatprep.mubr.f32.mxu0 0.0
      %839 = vmatmul.mubr.f32.gmra.mrb[0].mxu0 %v731
      %v840 = vpop.f32.mrb[0].mxu0
      %v841 = vadd.f32 %v767, %v840
      %v842 = vpop.f32.mrb[0].mxu0
      %843 = vmatprep.mubr.f32.mxu0 0.0
      %844 = vmatmul.mubr.f32.gmra.mrb[0].mxu0 %v732
      %v845 = vpop.f32.mrb[0].mxu0
      %v846 = vadd.f32 %v767, %v845
      %v847 = vpop.f32.mrb[0].mxu0
      %848 = vmatprep.mubr.f32.mxu0 0.0
      %849 = vmatmul.mubr.f32.gmra.mrb[0].mxu0 %v733
      %v850 = vpop.f32.mrb[0].mxu0
      %v851 = vadd.f32 %v767, %v850
      %v852 = vpop.f32.mrb[0].mxu0
      %853 = vmatprep.mubr.f32.mxu0 0.0
      %854 = vmatmul.mubr.f32.gmra.mrb[0].mxu0 %v734
      %v855 = vpop.f32.mrb[0].mxu0
      %v856 = vadd.f32 %v767, %v855
      %v857 = vpop.f32.mrb[0].mxu0
      %858 = vmatprep.mubr.f32.mxu0 0.0
      %859 = vmatmul.mubr.f32.gmra.mrb[0].mxu0 %v735
      %v860 = vpop.f32.mrb[0].mxu0
      %v861 = vadd.f32 %v767, %v860
      %v862 = vpop.f32.mrb[0].mxu0
      %863 = vmatprep.mubr.f32.mxu0 0.0
      %864 = vmatmul.mubr.f32.gmra.mrb[0].mxu0 %v736
      %v865 = vpop.f32.mrb[0].mxu0
      %v866 = vadd.f32 %v767, %v865
      %v867 = vpop.f32.mrb[0].mxu0
      %868 = vmatprep.mubr.f32.mxu0 0.0
      %869 = vmatmul.mubr.f32.gmra.mrb[0].mxu0 %v737
      %v870 = vpop.f32.mrb[0].mxu0
      %v871 = vadd.f32 %v767, %v870
      %v872 = vpop.f32.mrb[0].mxu0
      %873 = vmatprep.mubr.f32.mxu0 0.0
      %874 = vmatmul.mubr.f32.gmra.mrb[0].mxu0 %v738
      %v875 = vpop.f32.mrb[0].mxu0
      %v876 = vadd.f32 %v767, %v875
      %v877 = vpop.f32.mrb[0].mxu0
      %878 = vmatprep.mubr.f32.mxu0 0.0
      %879 = vmatmul.mubr.f32.gmra.mrb[0].mxu0 %v739
      %v880 = vpop.f32.mrb[0].mxu0
      %v881 = vadd.f32 %v767, %v880
      %v882 = vpop.f32.mrb[0].mxu0
      %883 = vmatprep.mubr.f32.mxu0 0.0
      %884 = vmatmul.mubr.f32.gmra.mrb[0].mxu0 %v740
      %v885 = vpop.f32.mrb[0].mxu0
      %v886 = vadd.f32 %v767, %v885
      %v887 = vpop.f32.mrb[0].mxu0
      %888 = vmatprep.mubr.f32.mxu0 0.0
      %889 = vmatmul.mubr.f32.gmra.mrb[0].mxu0 %v741
      %v890 = vpop.f32.mrb[0].mxu0
      %v891 = vadd.f32 %v767, %v890
      %v892 = vpop.f32.mrb[0].mxu0
      %893 = vmatprep.mubr.f32.mxu0 0.0
      %894 = vmatmul.mubr.f32.gmra.mrb[0].mxu0 %v742
      %v895 = vpop.f32.mrb[0].mxu0
      %v896 = vadd.f32 %v767, %v895
      %v897 = vpop.f32.mrb[0].mxu0
      %898 = vmatprep.mubr.f32.mxu0 0.0
      %899 = vmatmul.mubr.f32.gmra.mrb[0].mxu0 %v743
      %v900 = vpop.f32.mrb[0].mxu0
      %v901 = vadd.f32 %v767, %v900
      %v902 = vpop.f32.mrb[0].mxu0
      %903 = vmatprep.mubr.f32.mxu0 0.0
      %904 = vmatmul.mubr.f32.gmra.mrb[0].mxu0 %v744
      %v905 = vpop.f32.mrb[0].mxu0
      %v906 = vadd.f32 %v767, %v905
      %v907 = vpop.f32.mrb[0].mxu0
      %908 = vmatprep.mubr.f32.mxu0 0.0
      %909 = vmatmul.mubr.f32.gmra.mrb[0].mxu0 %v745
      %v910 = vpop.f32.mrb[0].mxu0
      %v911 = vadd.f32 %v767, %v910
      %v912 = vpop.f32.mrb[0].mxu0
      %913 = vdwg.mxu0
      %v914 = vmax.f32 %v836, 0.0
      %v915 = vmax.f32 %v841, 0.0
      %v916 = vmax.f32 %v846, 0.0
      %v917 = vmax.f32 %v851, 0.0
      %v918 = vmax.f32 %v856, 0.0
      %v919 = vmax.f32 %v861, 0.0
      %v920 = vmax.f32 %v866, 0.0
      %v921 = vmax.f32 %v871, 0.0
      %v922 = vmax.f32 %v876, 0.0
      %v923 = vmax.f32 %v881, 0.0
      %v924 = vmax.f32 %v886, 0.0
      %v925 = vmax.f32 %v891, 0.0
      %v926 = vmax.f32 %v896, 0.0
      %v927 = vmax.f32 %v901, 0.0
      %v928 = vmax.f32 %v906, 0.0
      %v929 = vmax.f32 %v911, 0.0
      %v930 = vld [vmem:[%s7] sm:$0xff]
      %v931 = vld [vmem:[%s8] sm:$0xff]
      %933 = vset.pattern.permute.xlu0 0
      %934 = vperm.xlu0 %933, %v931
      %v935 = vpop.permute.xlu0 %934
      %937 = vmatprep.subr.mxu0 0.0
      %938 = vmatpush1.xpose.msra.mxu0 %v914
      %939 = vmatprep.subr.mxu0 0.0
      %940 = vmatpush1.xpose.msra.mxu0 %v915
      %941 = vmatprep.subr.mxu0 0.0
      %942 = vmatpush1.xpose.msra.mxu0 %v916
      %943 = vmatprep.subr.mxu0 0.0
      %944 = vmatpush1.xpose.msra.mxu0 %v917
      %945 = vmatprep.subr.mxu0 0.0
      %946 = vmatpush1.xpose.msra.mxu0 %v918
      %947 = vmatprep.subr.mxu0 0.0
      %948 = vmatpush1.xpose.msra.mxu0 %v919
      %949 = vmatprep.subr.mxu0 0.0
      %950 = vmatpush1.xpose.msra.mxu0 %v920
      %951 = vmatprep.subr.mxu0 0.0
      %952 = vmatpush1.xpose.msra.mxu0 %v921
      %953 = vmatprep.subr.mxu0 0.0
      %954 = vmatpush1.xpose.msra.mxu0 %v922
      %955 = vmatprep.subr.mxu0 0.0
      %956 = vmatpush1.xpose.msra.mxu0 %v923
      %957 = vmatprep.subr.mxu0 0.0
      %958 = vmatpush1.xpose.msra.mxu0 %v924
      %959 = vmatprep.subr.mxu0 0.0
      %960 = vmatpush1.xpose.msra.mxu0 %v925
      %961 = vmatprep.subr.mxu0 0.0
      %962 = vmatpush1.xpose.msra.mxu0 %v926
      %963 = vmatprep.subr.mxu0 0.0
      %964 = vmatpush1.xpose.msra.mxu0 %v927
      %965 = vmatprep.subr.mxu0 0.0
      %966 = vmatpush1.xpose.msra.mxu0 %v928
      %967 = vmatprep.subr.mxu0 0.0
      %968 = vmatpush1.xpose.msra.mxu0 %v929
      %969 = vmatprep.subr.mxu0 0.0
      %970 = vmatpush1.xpose.msra.mxu0 0.0
      %971 = vmatprep.subr.mxu0 0.0
      %972 = vmatpush1.xpose.msra.mxu0 0.0
      %973 = vmatprep.subr.mxu0 0.0
      %974 = vmatpush1.xpose.msra.mxu0 0.0
      %975 = vmatprep.subr.mxu0 0.0
      %976 = vmatpush1.xpose.msra.mxu0 0.0
      %977 = vmatprep.subr.mxu0 0.0
      %978 = vmatpush1.xpose.msra.mxu0 0.0
      %979 = vmatprep.subr.mxu0 0.0
      %980 = vmatpush1.xpose.msra.mxu0 0.0
      %981 = vmatprep.subr.mxu0 0.0
      %982 = vmatpush1.xpose.msra.mxu0 0.0
      %983 = vmatprep.subr.mxu0 0.0
      %984 = vmatpush1.xpose.msra.mxu0 0.0
      %985 = vmatprep.subr.mxu0 0.0
      %986 = vmatpush1.xpose.msra.mxu0 0.0
      %987 = vmatprep.subr.mxu0 0.0
      %988 = vmatpush1.xpose.msra.mxu0 0.0
      %989 = vmatprep.subr.mxu0 0.0
      %990 = vmatpush1.xpose.msra.mxu0 0.0
      %991 = vmatprep.subr.mxu0 0.0
      %992 = vmatpush1.xpose.msra.mxu0 0.0
      %993 = vmatprep.subr.mxu0 0.0
      %994 = vmatpush1.xpose.msra.mxu0 0.0
      %995 = vmatprep.subr.mxu0 0.0
      %996 = vmatpush1.xpose.msra.mxu0 0.0
      %997 = vmatprep.subr.mxu0 0.0
      %998 = vmatpush1.xpose.msra.mxu0 0.0
      %999 = vmatprep.subr.mxu0 0.0
      %1000 = vmatpush1.xpose.msra.mxu0 0.0
      %1001 = vmatprep.mubr.f32.mxu0 0.0
      %1002 = vmatmul.mubr.f32.gmra.mrb[0].mxu0 %v930
      %v1003 = vpop.f32.mrb[0].mxu0
      %v1004 = vadd.f32 %v935, %v1003
      %v1005 = vpop.f32.mrb[0].mxu0
      %1006 = vdwg.mxu0
      %1007 = vst [vmem:[%s354] sm:$0xff] %v1004
      %p1008 = scmp.lt.s32.totalorder %s20, 1
      %s1009 = scalar_select %p1008, %s20, 1
      %s1010 = smul.addr %s1009, 8
      %s1011 = scalar_lea.vmem %s9, %s1010
      // Predicated region
      $region57: #{_lambda_.1} parent=55 // pred_check
        %p1012 = pneg %p237
      $region58: #{_lambda_.1} parent=55 // pred_check_branch
        %1014 = sbr.rel (%p1012) target = $region60
      $region59: #{_lambda_.1} parent=55 // pred_region
        _
      $region60: #{_lambda_.1} parent=55 // pred_fallthru
        _
    $region56: #{_lambda_.1} parent=5 // pred_fallthru
      _
    %p1015 = scmp.le.s32.totalorder 2, %s15
    // Predicated region
    $region61: #{_lambda_.1} parent=5 // pred_check
      %p1016 = pneg %p1015
    $region62: #{_lambda_.1} parent=5 // pred_check_branch
      %1018 = sbr.rel (%p1016) target = $region64
    $region63: #{_lambda_.1} parent=5 // pred_region
      %s1019 = ssub.s32 %s15, 2
      // Predicated region
      $region65: #{_lambda_.1} parent=63 // pred_check
        %p1020 = pneg %p243
      $region66: #{_lambda_.1} parent=63 // pred_check_branch
        %1022 = sbr.rel (%p1020) target = $region68
      $region67: #{_lambda_.1} parent=63 // pred_region
        %p1023 = scmp.lt.s32.totalorder %s21, 1
        %s1024 = scalar_select %p1023, %s21, 1
        %s1025 = smul.addr %s1024, 8
        %s1026 = scalar_lea.vmem %s9, %s1025
      $region68: #{_lambda_.1} parent=63 // pred_fallthru
        _
    $region64: #{_lambda_.1} parent=5 // pred_fallthru
      _
  $region6: #{_lambda_.1} parent=0 // loop_footer
    %s19 = sadd.s32 1, %s15
  $region7: #{_lambda_.1} parent=0 // loop_footer_branch
    %14 = sbr.rel target = $region3
  $region8: #{_lambda_.1} parent=0 // loop_exit
    _

</llo_original>
